<compile_context>
chip_gen: v6e
topology: v6e:2x2x1
jax: 0.10.0
libtpu: 0.0.40
codegen_flags: <defaults>
</compile_context>

<pallas_src>
import numpy as np
import jax
import jax.numpy as jnp
from jax.experimental import pallas as pl
from jax.experimental.pallas import tpu as pltpu


_BLOCK_BUDGET_BYTES = 4 * 1024 * 1024  # per output block; ~3x live buffers stays under
                                       # the scoped-VMEM default on v5e/v6e/v7x.


def _sublane_multiple(dtype):
    """Packed-sublane row multiple: 8 for 32-bit, 16 for 16-bit, 32 for 8-bit dtypes."""
    return max(8, 32 // jnp.dtype(dtype).itemsize)


def _pick_tiles(batch, X, YC, itemsize, sub):
    """Choose (BT, TX, TYC): batch / x / lane tile sizes for the output block."""
    budget = _BLOCK_BUDGET_BYTES

    # Lane-axis fallback: only tile Y*ch when even `sub` rows would exceed the budget.
    TYC = YC
    if sub * YC * itemsize > budget and YC % 128 == 0 and YC > 128:
        TYC = 128
        for cand in range(128, YC + 1, 128):
            if YC % cand == 0 and sub * cand * itemsize <= budget:
                TYC = cand
    row_bytes = TYC * itemsize

    # X tile: largest divisor of X that is a multiple of the packed sublane count and
    # fits the budget.  A full-extent block is always legal if X is not sub-aligned.
    if X % sub != 0:
        TX = X
    else:
        TX = sub
        for cand in range(sub, X + 1, sub):
            if X % cand == 0 and cand * row_bytes <= budget:
                TX = cand

    # Fold batch rows into the block when a whole (X, Y*ch) slice already fits, so the
    # ~0.35 us per-grid-step overhead is amortized for small spatial shapes.
    BT = 1
    if TX == X and TYC == YC:
        block_bytes = TX * row_bytes
        for cand in range(1, batch + 1):
            if batch % cand == 0 and cand * block_bytes <= budget:
                BT = cand
    return BT, TX, TYC


def _make_kernel(BT, TX, TYC):
    def kernel(slab_ref, out_ref):
        # Pure writeback: replicate the precomputed lane-dense tile across the BT batch
        # rows of this output block (one full-lane, unmasked store).
        out_ref[...] = jnp.broadcast_to(slab_ref[...][None, :, :], (BT, TX, TYC))
    return kernel


def positional_encoding_2d(tensor):
    """JAX/Pallas equivalent of PositionalEncoding2D(orig_ch)(tensor).

    tensor: (batch, x, y, ch) array.  Returns an array of the same shape & dtype.
    """
    if tensor.ndim != 4:
        raise RuntimeError("The input tensor has to be 4d!")
    batch, X, Y, orig_ch = tensor.shape
    out_dtype = tensor.dtype
    itemsize = jnp.dtype(out_dtype).itemsize

    # __init__: channels = ceil(orig_ch / 4) * 2 ; inv_freq = 1/10000^(arange(0,ch,2)/ch)
    channels = int(np.ceil(orig_ch / 4) * 2)
    inv_freq = 1.0 / (10000.0 ** (np.arange(0, channels, 2, dtype=np.float32) / channels))

    # Host-side sin/cos tables (tiny, batch-invariant).
    sin_inp_x = np.arange(X, dtype=np.float32)[:, None] * inv_freq[None, :]   # (X, ch/2)
    sin_inp_y = np.arange(Y, dtype=np.float32)[:, None] * inv_freq[None, :]   # (Y, ch/2)
    emb_x = np.concatenate([np.sin(sin_inp_x), np.cos(sin_inp_x)], axis=-1)   # (X, channels)
    emb_y = np.concatenate([np.sin(sin_inp_y), np.cos(sin_inp_y)], axis=-1)   # (Y, channels)

    kx = min(channels, orig_ch)   # output channels [0, kx) come from emb_x
    ky = orig_ch - kx             # output channels [kx, orig_ch) come from emb_y

    # Precompute the full lane-dense slab = one batch-slice of the output, pre-cast to
    # the output dtype so the kernel hot path is a pure copy.
    slab = np.zeros((X, Y, orig_ch), dtype=np.float32)
    slab[:, :, :kx] = emb_x[:, None, :kx]
    if ky > 0:
        slab[:, :, kx:] = emb_y[None, :, :ky]
    YC = Y * orig_ch
    slab = jnp.asarray(slab.reshape(X, YC)).astype(out_dtype)                 # (X, Y*ch)

    sub = _sublane_multiple(out_dtype)
    BT, TX, TYC = _pick_tiles(batch, X, YC, itemsize, sub)
    n_x, n_yc, n_b = X // TX, YC // TYC, batch // BT

    out_bytes = batch * X * YC * itemsize
    cost = pl.CostEstimate(flops=0, transcendentals=0,
                           bytes_accessed=out_bytes + X * YC * itemsize)

    out_flat = pl.pallas_call(
        _make_kernel(BT, TX, TYC),
        out_shape=jax.ShapeDtypeStruct((batch, X, YC), out_dtype),
        grid_spec=pltpu.PrefetchScalarGridSpec(
            num_scalar_prefetch=0,
            # batch innermost: the slab's block index is constant across consecutive
            # batch steps, so Pallas skips re-DMAing it (slab read ~ out_bytes/batch).
            grid=(n_x, n_yc, n_b),
            in_specs=[pl.BlockSpec((TX, TYC), lambda xi, yi, b: (xi, yi))],
            out_specs=pl.BlockSpec((BT, TX, TYC), lambda xi, yi, b: (b, xi, yi)),
        ),
        compiler_params=pltpu.CompilerParams(
            dimension_semantics=("parallel", "parallel", "parallel")),
        cost_estimate=cost,
    )(slab)

    # Free reshape of contiguous trailing dims back to the module's layout.
    return out_flat.reshape(batch, X, Y, orig_ch)


def _reference(tensor):
    """Pure-numpy reference mirroring the PyTorch forward exactly."""
    batch, X, Y, orig_ch = tensor.shape
    channels = int(np.ceil(orig_ch / 4) * 2)
    inv_freq = 1.0 / (10000.0 ** (np.arange(0, channels, 2, dtype=np.float32) / channels))
    pos_x = np.arange(X, dtype=np.float32)
    pos_y = np.arange(Y, dtype=np.float32)
    sin_inp_x = np.einsum("i,j->ij", pos_x, inv_freq)
    sin_inp_y = np.einsum("i,j->ij", pos_y, inv_freq)
    emb_x = np.concatenate([np.sin(sin_inp_x), np.cos(sin_inp_x)], axis=-1)[:, None, :]
    emb_y = np.concatenate([np.sin(sin_inp_y), np.cos(sin_inp_y)], axis=-1)
    emb = np.zeros((X, Y, channels * 2), dtype=np.float32)
    emb[:, :, :channels] = emb_x
    emb[:, :, channels:2 * channels] = emb_y
    out = np.repeat(emb[None, :, :, :orig_ch], batch, axis=0)
    return np.asarray(out, dtype=tensor.dtype)


if __name__ == "__main__":
    key = jax.random.PRNGKey(0)

    # (batch, x, y, ch) channels-last input, as in the PyTorch module.
    x = jax.random.normal(key, (2, 16, 16, 8), dtype=jnp.float32)
    out = jax.block_until_ready(positional_encoding_2d(x))
    assert out.shape == x.shape and out.dtype == x.dtype
    np.testing.assert_allclose(np.asarray(out), _reference(x), rtol=1e-5, atol=1e-5)

    # Second case exercising the emb_y split (orig_ch not a multiple of 4) and a
    # non-128-multiple lane width.
    x2 = jax.random.normal(key, (2, 16, 16, 6), dtype=jnp.float32)
    out2 = jax.block_until_ready(positional_encoding_2d(x2))
    np.testing.assert_allclose(np.asarray(out2), _reference(x2), rtol=1e-5, atol=1e-5)

    print("KERNEL_OK")
</pallas_src>

<mosaic_0001>
module attributes {stable_mosaic.version = 11 : i64} {
  func.func @kernel(%arg0: i32, %arg1: i32, %arg2: i32, %arg3: memref<16x128xf32, #tpu.memory_space<vmem>>, %arg4: memref<2x16x128xf32, #tpu.memory_space<vmem>>) attributes {dimension_semantics = [#tpu.dimension_semantics<parallel>, #tpu.dimension_semantics<parallel>, #tpu.dimension_semantics<parallel>], iteration_bounds = array<i64: 1, 1, 1>, scalar_prefetch = 0 : i64, scratch_operands = 0 : i64, tpu.core_type = #tpu.core_type<tc>, window_params = [{transform_indices = @transform_0, window_bounds = array<i64: 16, 128>}, {transform_indices = @transform_1, window_bounds = array<i64: 2, 16, 128>}]} {
    %c0 = arith.constant 0 : index
    %c0_0 = arith.constant 0 : index
    %0 = vector.load %arg3[%c0, %c0_0] : memref<16x128xf32, #tpu.memory_space<vmem>>, vector<16x128xf32>
    %1 = vector.shape_cast %0 : vector<16x128xf32> to vector<1x16x128xf32>
    %2 = vector.shape_cast %1 : vector<1x16x128xf32> to vector<1x16x128xf32>
    %3 = vector.broadcast %2 : vector<1x16x128xf32> to vector<2x16x128xf32>
    %c0_1 = arith.constant 0 : index
    %c0_2 = arith.constant 0 : index
    %c0_3 = arith.constant 0 : index
    %4 = vector.load %arg4[%c0_1, %c0_2, %c0_3] : memref<2x16x128xf32, #tpu.memory_space<vmem>>, vector<2x16x128xf32>
    tpu.vector_store %arg4[%c0_1, %c0_2, %c0_3], %3 {strides = array<i32>} : memref<2x16x128xf32, #tpu.memory_space<vmem>>, vector<2x16x128xf32>,
    return
  }
  func.func @transform_0(%arg0: i32, %arg1: i32, %arg2: i32) -> (i32, i32) {
    %c0_i32 = arith.constant 0 : i32
    return %arg0, %arg1 : i32, i32
  }
  func.func @transform_1(%arg0: i32, %arg1: i32, %arg2: i32) -> (i32, i32, i32) {
    %c0_i32 = arith.constant 0 : i32
    return %arg2, %arg0, %arg1 : i32, i32, i32
  }
}

</mosaic_0001>

<llo_original>
// kernel: tpu_custom_call.1
$region0: #{tpu_custom_call.1}
  #allocation0 [shape = 'u32[]', space=smem, size = 0x4, offset = 0x4, fixed_abs, tag = 'smem constant byte address 0x4 - core index']
  #allocation1 [shape = 'u32[144,128]{1,0:T(1,128)}', space=vmem, size = 0x12000, scoped, tag = 'internal scratch']
  %s0 = inlined_call_operand.hbm [shape: f32[16,128], index: 0, kind: input, shape index: {}]
  %s1 = inlined_call_operand.hbm [shape: f32[2,16,128], index: 1, kind: output, shape index: {}]
  %s2 = sld [smem:[#allocation0]]
  $region18: #{tpu_custom_call.1} parent=0
    _
  %s4 = ssub.s32 1, %s2
  %s5 = scalar_select 0, %s4, %s2
  $region1: #{tpu_custom_call.1} parent=0
    #allocation2 [shape = 'u8[8192]{0}', space=vmem, size = 0x2000, scoped, tag = 'input window, operand 0, single buffered']
    #allocation3 [shape = 's32[1]{0}', space=sflag, size = 0x4, scoped, tag = 'scoped memory for tpu_custom_call.1']
    #allocation4 [shape = 's32[1]{0}', space=sflag, size = 0x4, scoped, tag = 'scoped memory for tpu_custom_call.1']
    #allocation5 [shape = 'u8[16384]{0}', space=vmem, size = 0x4000, scoped, tag = 'output window, operand 0, single buffered']
    %6 = vsyncpa [#allocation3], 0
    %7 = vsyncpa [#allocation4], 0
    // Predicated region
    $region2: #{tpu_custom_call.1} parent=1 // pred_check
      _
    $region3: #{tpu_custom_call.1} parent=1 // pred_check_branch
      %9 = sbr.rel (0) target = $region5
    $region4: #{tpu_custom_call.1} parent=1 // pred_region
      %s11 = ssub.s32 256, 256
      %12 = vsyncadd [#allocation3], %s11
      %s13 = sshll.u32 [#allocation2], 4
      %s14 = int_to_ptr.vmem [resolvable:$true] %s13
      %19 = dma.hbm_to_vmem [thread:$0]  %s0, 256, %s14, [#allocation3], 128, 128, 8
    $region5: #{tpu_custom_call.1} parent=1 // pred_fallthru
      _
    // Predicated region
    $region6: #{tpu_custom_call.1} parent=1 // pred_check
      _
    $region7: #{tpu_custom_call.1} parent=1 // pred_check_branch
      %21 = sbr.rel (0) target = $region9
    $region8: #{tpu_custom_call.1} parent=1 // pred_region
      %22 = dma.done [#allocation3], 256
    $region9: #{tpu_custom_call.1} parent=1 // pred_fallthru
      _
    %v23 = vld [vmem:[#allocation2] sm:$0xff]
    %v24 = vld [vmem:[#allocation2 + $0x8] sm:$0xff]
    %25 = vst [vmem:[#allocation5] sm:$0xff] %v23
    %26 = vst [vmem:[#allocation5 + $0x8] sm:$0xff] %v24
    %27 = vst [vmem:[#allocation5 + $0x10] sm:$0xff] %v23
    %28 = vst [vmem:[#allocation5 + $0x18] sm:$0xff] %v24
    // Predicated region
    $region10: #{tpu_custom_call.1} parent=1 // pred_check
      _
    $region11: #{tpu_custom_call.1} parent=1 // pred_check_branch
      %30 = sbr.rel (0) target = $region13
    $region12: #{tpu_custom_call.1} parent=1 // pred_region
      %s32 = ssub.s32 512, 512
      %33 = vsyncadd [#allocation4], %s32
      %s34 = sshll.u32 [#allocation5], 4
      %s35 = int_to_ptr.vmem [resolvable:$true] %s34
      %40 = dma.vmem_to_hbm [thread:$0]  %s35, 512, %s1, [#allocation4], 128, 128, 8
    $region13: #{tpu_custom_call.1} parent=1 // pred_fallthru
      _
    // Predicated region
    $region14: #{tpu_custom_call.1} parent=1 // pred_check
      _
    $region15: #{tpu_custom_call.1} parent=1 // pred_check_branch
      %42 = sbr.rel (0) target = $region17
    $region16: #{tpu_custom_call.1} parent=1 // pred_region
      %43 = dma.done [#allocation4], 512
    $region17: #{tpu_custom_call.1} parent=1 // pred_fallthru
      _
    %44 = vsyncpa [#allocation3], 1
    %45 = vsyncpa [#allocation4], 1

</llo_original>
